<compile_context>
chip_gen: v7x
topology: tpu7x:2x2x1
jax: 0.10.0
libtpu: 0.0.40
codegen_flags: <defaults>
</compile_context>

<pallas_src>
import functools

import jax
import jax.numpy as jnp
from jax.experimental import pallas as pl
from jax.experimental.pallas import tpu as pltpu


def _mlp_kernel(*refs, num_layers: int):
    """refs = (x, w0, b0, w1, b1, ..., w_{L-1}, b_{L-1}, out)."""
    x_ref = refs[0]
    o_ref = refs[-1]
    wb = refs[1:-1]

    x = x_ref[...].astype(jnp.float32)
    for l in range(num_layers):
        w = wb[2 * l][...]                          # bf16 weights, [in, out]
        b = wb[2 * l + 1][...].astype(jnp.float32)  # f32 bias, [1, out]
        # MXU matmul: bf16 operands, f32 accumulation.
        x = jnp.dot(x.astype(w.dtype), w, preferred_element_type=jnp.float32)
        x = x + b                                   # f32 epilogue
        if l < num_layers - 1:                      # hidden layers: ReLU
            x = jnp.maximum(x, 0.0)
        # TODO(synk): on v6e/v7x with wide hidden layers, keep inter-layer
        # activations in bf16 here to cut vreg pressure; left f32 (v5e-safe).
    o_ref[...] = x.astype(o_ref.dtype)


def _round_up(x, m):
    return ((x + m - 1) // m) * m


def dqn_forward(obs, params, *, block_batch=4096):
    """obs: [B, input_size]; params: list of (W_bf16[in,out], b_f32[1,out])."""
    B, in_f = obs.shape
    out_f = int(params[-1][0].shape[1])
    num_layers = len(params)

    # Batch tiling: tiny batches -> single grid step (whole batch, one block);
    # large batches -> even step count (balanced v7x megacore split), tb a
    # multiple of 8, weights VMEM-resident while x/out stream through.
    if B <= block_batch:
        tb, steps, b_pad = B, 1, B
        x = obs
    else:
        steps = -(-B // block_batch)
        steps += steps % 2                          # even -> balanced megacore
        tb = _round_up(-(-B // steps), 8)
        b_pad = steps * tb
        x = jnp.pad(obs, ((0, b_pad - B), (0, 0)))

    in_specs = [pl.BlockSpec((tb, in_f), lambda i: (i, 0))]
    flat_args = [x]
    for w, b in params:
        # Full-array blocks, constant index_map -> fetched once and reused
        # (no re-DMA) across grid steps.
        # TODO(synk): on v7x, pipeline_mode=pl.Buffered(1) on these constant
        # specs would drop the unused second weight buffer; omitted here for
        # portability (bf16 storage already halves the resident footprint).
        in_specs.append(pl.BlockSpec(w.shape, lambda i: (0, 0)))
        in_specs.append(pl.BlockSpec(b.shape, lambda i: (0, 0)))
        flat_args.extend([w, b])
    out_specs = pl.BlockSpec((tb, out_f), lambda i: (i, 0))

    # Advisory cost estimate (bf16 weights, f32 activations).
    flops = 2 * b_pad * sum(int(w.shape[0]) * int(w.shape[1]) for w, _ in params)
    weight_bytes = sum(int(w.size) * w.dtype.itemsize + int(b.size) * b.dtype.itemsize
                       for w, b in params)
    bytes_accessed = (b_pad * in_f * obs.dtype.itemsize
                      + b_pad * out_f * obs.dtype.itemsize
                      + weight_bytes)
    cost = pl.CostEstimate(flops=flops, transcendentals=0,
                           bytes_accessed=int(bytes_accessed))

    # VMEM budget: resident weights (x2 for default double-buffering) +
    # double-buffered x/out blocks + f32 activations, with headroom.
    max_width = max([in_f, out_f] + [int(w.shape[1]) for w, _ in params])
    need = (2 * weight_bytes
            + 2 * tb * (in_f + out_f) * 4
            + 2 * tb * max_width * 4)
    vmem_limit = min(max(32 << 20, int(need * 1.5) + (2 << 20)), 64 << 20)
    # TODO(synk): if `need` approaches the per-generation VMEM ceiling
    # (64 MiB on v7x), stream/tile weights per layer instead of residency.

    kernel = functools.partial(_mlp_kernel, num_layers=num_layers)
    q = pl.pallas_call(
        kernel,
        out_shape=jax.ShapeDtypeStruct((b_pad, out_f), obs.dtype),
        grid=(steps,),
        in_specs=in_specs,
        out_specs=out_specs,
        compiler_params=pltpu.CompilerParams(
            dimension_semantics=("parallel",),     # megacore sharding on v7x
            vmem_limit_bytes=vmem_limit),
        cost_estimate=cost,
    )(*flat_args)
    return q if b_pad == B else q[:B]


def init_dqn_params(key, input_size, action_size, hidden_layers):
    """Deterministic synthetic params (PyTorch-Linear-style fan-in uniform init), f32."""
    params = []
    sizes = [input_size] + list(hidden_layers) + [action_size]
    for i in range(len(sizes) - 1):
        fan_in, fan_out = sizes[i], sizes[i + 1]
        key, kw, kb = jax.random.split(key, 3)
        bound = 1.0 / jnp.sqrt(jnp.float32(fan_in))
        w = jax.random.uniform(kw, (fan_in, fan_out), jnp.float32, -bound, bound)
        b = jax.random.uniform(kb, (1, fan_out), jnp.float32, -bound, bound)
        params.append((w, b))
    return params


def prepare_params(params):
    """One-time host-side prep: bf16 weight storage, f32 biases.  Done outside
    the jitted forward so no per-call cast/pad XLA ops are launched."""
    return [(w.astype(jnp.bfloat16), b.astype(jnp.float32)) for w, b in params]


def _reference_forward(obs, prepared_params):
    """Pure-JAX reference with the same numerics (bf16 operands, f32 accum)."""
    x = obs.astype(jnp.float32)
    n = len(prepared_params)
    for i, (w, b) in enumerate(prepared_params):
        y = jnp.dot(x.astype(jnp.bfloat16), w,
                    preferred_element_type=jnp.float32) + b.astype(jnp.float32)
        x = jnp.maximum(y, 0.0) if i < n - 1 else y
    return x


if __name__ == "__main__":
    input_size = 16
    action_size = 4
    hidden_layers = (32, 32)
    batch = 2

    key = jax.random.PRNGKey(0)
    key, kobs = jax.random.split(key)
    obs = jax.random.normal(kobs, (batch, input_size), jnp.float32)
    params_f32 = init_dqn_params(key, input_size, action_size, hidden_layers)
    params = prepare_params(params_f32)   # bf16 weights, prepared once

    fwd = jax.jit(dqn_forward)

    # Tiny latency-bound path (single grid step, fully fused kernel).
    q = fwd(obs, params)
    jax.block_until_ready(q)
    q_ref = _reference_forward(obs, params)
    assert q.shape == (batch, action_size)
    assert jnp.allclose(q, q_ref, atol=2e-3, rtol=2e-3)

    # Larger batch still runs as one grid step with block_batch=4096 but
    # exercises a non-multiple-of-8 batch and the unpadded output store.
    key, kbig = jax.random.split(key)
    obs_big = jax.random.normal(kbig, (1000, input_size), jnp.float32)
    q_big = fwd(obs_big, params)
    jax.block_until_ready(q_big)
    q_big_ref = _reference_forward(obs_big, params)
    assert q_big.shape == (1000, action_size)
    assert jnp.allclose(q_big, q_big_ref, atol=2e-3, rtol=2e-3)

    print("KERNEL_OK")
</pallas_src>

<mosaic_0001>
module attributes {stable_mosaic.version = 11 : i64} {
  func.func @_mlp_kernel(%arg0: i32, %arg1: memref<2x16xf32, #tpu.memory_space<vmem>>, %arg2: memref<16x32xbf16, #tpu.memory_space<vmem>>, %arg3: memref<1x32xf32, #tpu.memory_space<vmem>>, %arg4: memref<32x32xbf16, #tpu.memory_space<vmem>>, %arg5: memref<1x32xf32, #tpu.memory_space<vmem>>, %arg6: memref<32x4xbf16, #tpu.memory_space<vmem>>, %arg7: memref<1x4xf32, #tpu.memory_space<vmem>>, %arg8: memref<2x4xf32, #tpu.memory_space<vmem>>) attributes {dimension_semantics = [#tpu.dimension_semantics<parallel>], iteration_bounds = array<i64: 1>, scalar_prefetch = 0 : i64, scratch_operands = 0 : i64, tpu.core_type = #tpu.core_type<tc>, window_params = [{transform_indices = @transform_0, window_bounds = array<i64: 2, 16>}, {pipeline_mode = #tpu.pipeline_mode<synchronous>, transform_indices = @transform_1, window_bounds = array<i64: 16, 32>}, {pipeline_mode = #tpu.pipeline_mode<synchronous>, transform_indices = @transform_2, window_bounds = array<i64: 1, 32>}, {pipeline_mode = #tpu.pipeline_mode<synchronous>, transform_indices = @transform_3, window_bounds = array<i64: 32, 32>}, {pipeline_mode = #tpu.pipeline_mode<synchronous>, transform_indices = @transform_4, window_bounds = array<i64: 1, 32>}, {pipeline_mode = #tpu.pipeline_mode<synchronous>, transform_indices = @transform_5, window_bounds = array<i64: 32, 4>}, {pipeline_mode = #tpu.pipeline_mode<synchronous>, transform_indices = @transform_6, window_bounds = array<i64: 1, 4>}, {transform_indices = @transform_7, window_bounds = array<i64: 2, 4>}]} {
    %c0 = arith.constant 0 : index
    %c0_0 = arith.constant 0 : index
    %0 = vector.load %arg1[%c0, %c0_0] : memref<2x16xf32, #tpu.memory_space<vmem>>, vector<2x16xf32>
    %c0_1 = arith.constant 0 : index
    %c0_2 = arith.constant 0 : index
    %1 = vector.load %arg2[%c0_1, %c0_2] : memref<16x32xbf16, #tpu.memory_space<vmem>>, vector<16x32xbf16>
    %c0_3 = arith.constant 0 : index
    %c0_4 = arith.constant 0 : index
    %2 = vector.load %arg3[%c0_3, %c0_4] : memref<1x32xf32, #tpu.memory_space<vmem>>, vector<1x32xf32>
    %3 = arith.truncf %0 : vector<2x16xf32> to vector<2x16xbf16>
    %cst = arith.constant dense<0.000000e+00> : vector<2x32xf32>
    %4 = tpu.matmul %3, %1, %cst {dimension_numbers = #tpu.dot_dimension_numbers<[1], [0], [0], [1], [0, 0, 1, 1], [], []>} : vector<2x16xbf16>, vector<16x32xbf16>, vector<2x32xf32> -> vector<2x32xf32>
    %5 = vector.broadcast %2 : vector<1x32xf32> to vector<2x32xf32>
    %6 = arith.addf %4, %5 : vector<2x32xf32>
    %cst_5 = arith.constant 0.000000e+00 : f32
    %7 = vector.broadcast %cst_5 : f32 to vector<2x32xf32>
    %8 = arith.maximumf %6, %7 : vector<2x32xf32>
    %c0_6 = arith.constant 0 : index
    %c0_7 = arith.constant 0 : index
    %9 = vector.load %arg4[%c0_6, %c0_7] : memref<32x32xbf16, #tpu.memory_space<vmem>>, vector<32x32xbf16>
    %c0_8 = arith.constant 0 : index
    %c0_9 = arith.constant 0 : index
    %10 = vector.load %arg5[%c0_8, %c0_9] : memref<1x32xf32, #tpu.memory_space<vmem>>, vector<1x32xf32>
    %11 = arith.truncf %8 : vector<2x32xf32> to vector<2x32xbf16>
    %cst_10 = arith.constant dense<0.000000e+00> : vector<2x32xf32>
    %12 = tpu.matmul %11, %9, %cst_10 {dimension_numbers = #tpu.dot_dimension_numbers<[1], [0], [0], [1], [0, 0, 1, 1], [], []>} : vector<2x32xbf16>, vector<32x32xbf16>, vector<2x32xf32> -> vector<2x32xf32>
    %13 = vector.broadcast %10 : vector<1x32xf32> to vector<2x32xf32>
    %14 = arith.addf %12, %13 : vector<2x32xf32>
    %cst_11 = arith.constant 0.000000e+00 : f32
    %15 = vector.broadcast %cst_11 : f32 to vector<2x32xf32>
    %16 = arith.maximumf %14, %15 : vector<2x32xf32>
    %c0_12 = arith.constant 0 : index
    %c0_13 = arith.constant 0 : index
    %17 = vector.load %arg6[%c0_12, %c0_13] : memref<32x4xbf16, #tpu.memory_space<vmem>>, vector<32x4xbf16>
    %c0_14 = arith.constant 0 : index
    %c0_15 = arith.constant 0 : index
    %18 = vector.load %arg7[%c0_14, %c0_15] : memref<1x4xf32, #tpu.memory_space<vmem>>, vector<1x4xf32>
    %19 = arith.truncf %16 : vector<2x32xf32> to vector<2x32xbf16>
    %cst_16 = arith.constant dense<0.000000e+00> : vector<2x4xf32>
    %20 = tpu.matmul %19, %17, %cst_16 {dimension_numbers = #tpu.dot_dimension_numbers<[1], [0], [0], [1], [0, 0, 1, 1], [], []>} : vector<2x32xbf16>, vector<32x4xbf16>, vector<2x4xf32> -> vector<2x4xf32>
    %21 = vector.broadcast %18 : vector<1x4xf32> to vector<2x4xf32>
    %22 = arith.addf %20, %21 : vector<2x4xf32>
    %c0_17 = arith.constant 0 : index
    %c0_18 = arith.constant 0 : index
    %23 = vector.load %arg8[%c0_17, %c0_18] : memref<2x4xf32, #tpu.memory_space<vmem>>, vector<2x4xf32>
    tpu.vector_store %arg8[%c0_17, %c0_18], %22 {strides = array<i32>} : memref<2x4xf32, #tpu.memory_space<vmem>>, vector<2x4xf32>,
    return
  }
  func.func @transform_0(%arg0: i32) -> (i32, i32) {
    %c0_i32 = arith.constant 0 : i32
    %c0_i32_0 = arith.constant 0 : i32
    return %arg0, %c0_i32 : i32, i32
  }
  func.func @transform_1(%arg0: i32) -> (i32, i32) {
    %c0_i32 = arith.constant 0 : i32
    %c0_i32_0 = arith.constant 0 : i32
    %c0_i32_1 = arith.constant 0 : i32
    return %c0_i32, %c0_i32_0 : i32, i32
  }
  func.func @transform_2(%arg0: i32) -> (i32, i32) {
    %c0_i32 = arith.constant 0 : i32
    %c0_i32_0 = arith.constant 0 : i32
    %c0_i32_1 = arith.constant 0 : i32
    return %c0_i32, %c0_i32_0 : i32, i32
  }
  func.func @transform_3(%arg0: i32) -> (i32, i32) {
    %c0_i32 = arith.constant 0 : i32
    %c0_i32_0 = arith.constant 0 : i32
    %c0_i32_1 = arith.constant 0 : i32
    return %c0_i32, %c0_i32_0 : i32, i32
  }
  func.func @transform_4(%arg0: i32) -> (i32, i32) {
    %c0_i32 = arith.constant 0 : i32
    %c0_i32_0 = arith.constant 0 : i32
    %c0_i32_1 = arith.constant 0 : i32
    return %c0_i32, %c0_i32_0 : i32, i32
  }
  func.func @transform_5(%arg0: i32) -> (i32, i32) {
    %c0_i32 = arith.constant 0 : i32
    %c0_i32_0 = arith.constant 0 : i32
    %c0_i32_1 = arith.constant 0 : i32
    return %c0_i32, %c0_i32_0 : i32, i32
  }
  func.func @transform_6(%arg0: i32) -> (i32, i32) {
    %c0_i32 = arith.constant 0 : i32
    %c0_i32_0 = arith.constant 0 : i32
    %c0_i32_1 = arith.constant 0 : i32
    return %c0_i32, %c0_i32_0 : i32, i32
  }
  func.func @transform_7(%arg0: i32) -> (i32, i32) {
    %c0_i32 = arith.constant 0 : i32
    %c0_i32_0 = arith.constant 0 : i32
    return %arg0, %c0_i32 : i32, i32
  }
}

</mosaic_0001>

<llo_original>
// kernel: dqn_forward.1
$region0: #{dqn_forward.1}
  #allocation0 [shape = 'u32[]', space=smem, size = 0x4, offset = 0x4, fixed_abs, tag = 'smem constant byte address 0x4 - core index']
  #allocation1 [shape = 'u32[144,128]{1,0:T(1,128)}', space=vmem, size = 0x12000, scoped, tag = 'internal scratch']
  %s0 = inlined_call_operand.vmem [shape: f32[2,16], index: 0, kind: input, shape index: {}]
  %s1 = inlined_call_operand.vmem [shape: bf16[16,32], index: 1, kind: input, shape index: {}]
  %s2 = inlined_call_operand.vmem [shape: f32[1,32], index: 2, kind: input, shape index: {}]
  %s3 = inlined_call_operand.vmem [shape: bf16[32,32], index: 3, kind: input, shape index: {}]
  %s4 = inlined_call_operand.vmem [shape: f32[1,32], index: 4, kind: input, shape index: {}]
  %s5 = inlined_call_operand.vmem [shape: bf16[32,4], index: 5, kind: input, shape index: {}]
  %s6 = inlined_call_operand.vmem [shape: f32[1,4], index: 6, kind: input, shape index: {}]
  %s7 = inlined_call_operand.hbm [shape: f32[2,4], index: 7, kind: output, shape index: {}]
  %s8 = sld [smem:[#allocation0]]
  $region38: #{dqn_forward.1} parent=0
    _
  %s10 = ssub.s32 1, %s8
  %s11 = scalar_select 0, %s10, %s8
  $region1: #{dqn_forward.1} parent=0
    #allocation2 [shape = 'u8[1024]{0}', space=vmem, size = 0x400, scoped, tag = 'output window, operand 0, single buffered']
    #allocation3 [shape = 's32[1]{0}', space=sflag, size = 0x4, scoped, tag = 'scoped memory for dqn_forward.1']
    %12 = vsyncpa [#allocation3], 0
    // Predicated region
    $region2: #{dqn_forward.1} parent=1 // pred_check
      _
    $region3: #{dqn_forward.1} parent=1 // pred_check_branch
      %14 = sbr.rel (0) target = $region5
    $region4: #{dqn_forward.1} parent=1 // pred_region
      _
    $region5: #{dqn_forward.1} parent=1 // pred_fallthru
      _
    // Predicated region
    $region6: #{dqn_forward.1} parent=1 // pred_check
      _
    $region7: #{dqn_forward.1} parent=1 // pred_check_branch
      %16 = sbr.rel (0) target = $region9
    $region8: #{dqn_forward.1} parent=1 // pred_region
      _
    $region9: #{dqn_forward.1} parent=1 // pred_fallthru
      _
    // Predicated region
    $region10: #{dqn_forward.1} parent=1 // pred_check
      _
    $region11: #{dqn_forward.1} parent=1 // pred_check_branch
      %18 = sbr.rel (0) target = $region13
    $region12: #{dqn_forward.1} parent=1 // pred_region
      _
    $region13: #{dqn_forward.1} parent=1 // pred_fallthru
      _
    // Predicated region
    $region14: #{dqn_forward.1} parent=1 // pred_check
      _
    $region15: #{dqn_forward.1} parent=1 // pred_check_branch
      %20 = sbr.rel (0) target = $region17
    $region16: #{dqn_forward.1} parent=1 // pred_region
      _
    $region17: #{dqn_forward.1} parent=1 // pred_fallthru
      _
    // Predicated region
    $region18: #{dqn_forward.1} parent=1 // pred_check
      _
    $region19: #{dqn_forward.1} parent=1 // pred_check_branch
      %22 = sbr.rel (0) target = $region21
    $region20: #{dqn_forward.1} parent=1 // pred_region
      _
    $region21: #{dqn_forward.1} parent=1 // pred_fallthru
      _
    // Predicated region
    $region22: #{dqn_forward.1} parent=1 // pred_check
      _
    $region23: #{dqn_forward.1} parent=1 // pred_check_branch
      %24 = sbr.rel (0) target = $region25
    $region24: #{dqn_forward.1} parent=1 // pred_region
      _
    $region25: #{dqn_forward.1} parent=1 // pred_fallthru
      _
    // Predicated region
    $region26: #{dqn_forward.1} parent=1 // pred_check
      _
    $region27: #{dqn_forward.1} parent=1 // pred_check_branch
      %26 = sbr.rel (0) target = $region29
    $region28: #{dqn_forward.1} parent=1 // pred_region
      _
    $region29: #{dqn_forward.1} parent=1 // pred_fallthru
      _
    %v28 = vld [vmem:[%s0] sm:$0x3]
    %v29 = vld [vmem:[%s1] sm:$0xf]
    %v30 = vld [vmem:[%s1 + $0x4] sm:$0xf]
    %v31 = vld [vmem:[%s2] sm:$0x1]
    %v32 = vpack.c.bf16 %v28, %v28
    %v34 = vlaneseq
    %v35 = vshrl.u32 %v34, 7
    %v36 = vsub.s32 0, %v35
    %v37 = vrot.slane %v31, %v36
    %v41 = vunpack.c.l.b16 %v29
    %v42 = vunpack.c.l.b16 %v30
    %v43 = vpack.c.b16 %v42, %v41
    %vm45 = vcmask 130048
    %v47 = vsel %vm45, %v32, 0
    %49 = vmatprep.subr.bf16.mxu0 0
    %50 = vmatpush1.bf16.msra.mxu0 %v43
    %51 = vmatprep.subr.bf16.mxu0 0
    %52 = vmatpush1.bf16.msra.mxu0 0
    %53 = vmatprep.subr.bf16.mxu0 0
    %54 = vmatpush1.bf16.msra.mxu0 0
    %55 = vmatprep.subr.bf16.mxu0 0
    %56 = vmatpush1.bf16.msra.mxu0 0
    %57 = vmatprep.subr.bf16.mxu0 0
    %58 = vmatpush1.bf16.msra.mxu0 0
    %59 = vmatprep.subr.bf16.mxu0 0
    %60 = vmatpush1.bf16.msra.mxu0 0
    %61 = vmatprep.subr.bf16.mxu0 0
    %62 = vmatpush1.bf16.msra.mxu0 0
    %63 = vmatprep.subr.bf16.mxu0 0
    %64 = vmatpush1.bf16.msra.mxu0 0
    %65 = vmatprep.subr.bf16.mxu0 0
    %66 = vmatpush1.bf16.msra.mxu0 0
    %67 = vmatprep.subr.bf16.mxu0 0
    %68 = vmatpush1.bf16.msra.mxu0 0
    %69 = vmatprep.subr.bf16.mxu0 0
    %70 = vmatpush1.bf16.msra.mxu0 0
    %71 = vmatprep.subr.bf16.mxu0 0
    %72 = vmatpush1.bf16.msra.mxu0 0
    %73 = vmatprep.subr.bf16.mxu0 0
    %74 = vmatpush1.bf16.msra.mxu0 0
    %75 = vmatprep.subr.bf16.mxu0 0
    %76 = vmatpush1.bf16.msra.mxu0 0
    %77 = vmatprep.subr.bf16.mxu0 0
    %78 = vmatpush1.bf16.msra.mxu0 0
    %79 = vmatprep.subr.bf16.mxu0 0
    %80 = vmatpush1.bf16.msra.mxu0 0
    %81 = vmatprep.mubr.bf16.mxu0 0
    %82 = vmatmul.mubr.bf16.gmra.mrb[0].mxu0 %v47
    %v83 = vpop.f32.mrb[0].mxu0
    %v84 = vadd.f32 %v37, %v83
    %v85 = vpop.f32.mrb[0].mxu0
    %v86 = vpop.f32.mrb[0].mxu0
    %v87 = vpop.f32.mrb[0].mxu0
    %88 = vdwg.mxu0
    %v89 = vmax.f32 %v84, 0.0
    %v90 = vld [vmem:[%s3] sm:$0xf]
    %v91 = vld [vmem:[%s3 + $0x4] sm:$0xf]
    %v92 = vld [vmem:[%s3 + $0x8] sm:$0xf]
    %v93 = vld [vmem:[%s3 + $0xc] sm:$0xf]
    %v94 = vld [vmem:[%s4] sm:$0x1]
    %v95 = vpack.c.bf16 %v89, %v89
    %v97 = vlaneseq
    %v98 = vshrl.u32 %v97, 7
    %v99 = vsub.s32 0, %v98
    %v100 = vrot.slane %v94, %v99
    %v106 = vunpack.c.l.b16 %v90
    %v107 = vunpack.c.l.b16 %v91
    %v108 = vunpack.c.l.b16 %v92
    %v109 = vunpack.c.l.b16 %v93
    %v110 = vpack.c.b16 %v107, %v106
    %v111 = vpack.c.b16 %v109, %v108
    %vm114 = vcmask 261120
    %v116 = vsel %vm114, %v95, 0
    %118 = vmatprep.subr.bf16.mxu0 0
    %119 = vmatpush1.bf16.msra.mxu0 %v110
    %120 = vmatprep.subr.bf16.mxu0 0
    %121 = vmatpush1.bf16.msra.mxu0 %v111
    %122 = vmatprep.subr.bf16.mxu0 0
    %123 = vmatpush1.bf16.msra.mxu0 0
    %124 = vmatprep.subr.bf16.mxu0 0
    %125 = vmatpush1.bf16.msra.mxu0 0
    %126 = vmatprep.subr.bf16.mxu0 0
    %127 = vmatpush1.bf16.msra.mxu0 0
    %128 = vmatprep.subr.bf16.mxu0 0
    %129 = vmatpush1.bf16.msra.mxu0 0
    %130 = vmatprep.subr.bf16.mxu0 0
    %131 = vmatpush1.bf16.msra.mxu0 0
    %132 = vmatprep.subr.bf16.mxu0 0
    %133 = vmatpush1.bf16.msra.mxu0 0
    %134 = vmatprep.subr.bf16.mxu0 0
    %135 = vmatpush1.bf16.msra.mxu0 0
    %136 = vmatprep.subr.bf16.mxu0 0
    %137 = vmatpush1.bf16.msra.mxu0 0
    %138 = vmatprep.subr.bf16.mxu0 0
    %139 = vmatpush1.bf16.msra.mxu0 0
    %140 = vmatprep.subr.bf16.mxu0 0
    %141 = vmatpush1.bf16.msra.mxu0 0
    %142 = vmatprep.subr.bf16.mxu0 0
    %143 = vmatpush1.bf16.msra.mxu0 0
    %144 = vmatprep.subr.bf16.mxu0 0
    %145 = vmatpush1.bf16.msra.mxu0 0
    %146 = vmatprep.subr.bf16.mxu0 0
    %147 = vmatpush1.bf16.msra.mxu0 0
    %148 = vmatprep.subr.bf16.mxu0 0
    %149 = vmatpush1.bf16.msra.mxu0 0
    %150 = vmatprep.mubr.bf16.mxu0 0
    %151 = vmatmul.mubr.bf16.gmra.mrb[0].mxu0 %v116
    %v152 = vpop.f32.mrb[0].mxu0
    %v153 = vadd.f32 %v100, %v152
    %v154 = vpop.f32.mrb[0].mxu0
    %v155 = vpop.f32.mrb[0].mxu0
    %v156 = vpop.f32.mrb[0].mxu0
    %157 = vdwg.mxu0
    %v158 = vmax.f32 %v153, 0.0
    %v159 = vld [vmem:[%s5] sm:$0xf]
    %v160 = vld [vmem:[%s5 + $0x4] sm:$0xf]
    %v161 = vld [vmem:[%s5 + $0x8] sm:$0xf]
    %v162 = vld [vmem:[%s5 + $0xc] sm:$0xf]
    %v163 = vld [vmem:[%s6] sm:$0x1]
    %v164 = vpack.c.bf16 %v158, %v158
    %v166 = vlaneseq
    %v167 = vshrl.u32 %v166, 7
    %v168 = vsub.s32 0, %v167
    %v169 = vrot.slane %v163, %v168
    %v175 = vunpack.c.l.b16 %v159
    %v176 = vunpack.c.l.b16 %v160
    %v177 = vunpack.c.l.b16 %v161
    %v178 = vunpack.c.l.b16 %v162
    %v179 = vpack.c.b16 %v176, %v175
    %v180 = vpack.c.b16 %v178, %v177
    %v184 = vsel %vm114, %v164, 0
    %186 = vmatprep.subr.bf16.mxu0 0
    %187 = vmatpush1.bf16.msra.mxu0 %v179
    %188 = vmatprep.subr.bf16.mxu0 0
    %189 = vmatpush1.bf16.msra.mxu0 %v180
    %190 = vmatprep.subr.bf16.mxu0 0
    %191 = vmatpush1.bf16.msra.mxu0 0
    %192 = vmatprep.subr.bf16.mxu0 0
    %193 = vmatpush1.bf16.msra.mxu0 0
    %194 = vmatprep.subr.bf16.mxu0 0
    %195 = vmatpush1.bf16.msra.mxu0 0
    %196 = vmatprep.subr.bf16.mxu0 0
    %197 = vmatpush1.bf16.msra.mxu0 0
    %198 = vmatprep.subr.bf16.mxu0 0
    %199 = vmatpush1.bf16.msra.mxu0 0
    %200 = vmatprep.subr.bf16.mxu0 0
    %201 = vmatpush1.bf16.msra.mxu0 0
    %202 = vmatprep.subr.bf16.mxu0 0
    %203 = vmatpush1.bf16.msra.mxu0 0
    %204 = vmatprep.subr.bf16.mxu0 0
    %205 = vmatpush1.bf16.msra.mxu0 0
    %206 = vmatprep.subr.bf16.mxu0 0
    %207 = vmatpush1.bf16.msra.mxu0 0
    %208 = vmatprep.subr.bf16.mxu0 0
    %209 = vmatpush1.bf16.msra.mxu0 0
    %210 = vmatprep.subr.bf16.mxu0 0
    %211 = vmatpush1.bf16.msra.mxu0 0
    %212 = vmatprep.subr.bf16.mxu0 0
    %213 = vmatpush1.bf16.msra.mxu0 0
    %214 = vmatprep.subr.bf16.mxu0 0
    %215 = vmatpush1.bf16.msra.mxu0 0
    %216 = vmatprep.subr.bf16.mxu0 0
    %217 = vmatpush1.bf16.msra.mxu0 0
    %218 = vmatprep.mubr.bf16.mxu0 0
    %219 = vmatmul.mubr.bf16.gmra.mrb[0].mxu0 %v184
    %v220 = vpop.f32.mrb[0].mxu0
    %v221 = vadd.f32 %v169, %v220
    %v222 = vpop.f32.mrb[0].mxu0
    %v223 = vpop.f32.mrb[0].mxu0
    %v224 = vpop.f32.mrb[0].mxu0
    %225 = vdwg.mxu0
    %vm226 = vcmask 25600
    %227 = vst.msk [vmem:[#allocation2] sm:$0x3] %vm226, %v221
    // Predicated region
    $region30: #{dqn_forward.1} parent=1 // pred_check
      _
    $region31: #{dqn_forward.1} parent=1 // pred_check_branch
      %229 = sbr.rel (0) target = $region33
    $region32: #{dqn_forward.1} parent=1 // pred_region
      %s231 = ssub.s32 32, 32
      %232 = vsyncadd [#allocation3], %s231
      %s234 = sshll.u32 [#allocation2], 4
      %s235 = int_to_ptr.vmem [resolvable:$true] %s234
      %237 = dma.vmem_to_hbm [thread:$0]  %s235, 32, %s7, [#allocation3]
    $region33: #{dqn_forward.1} parent=1 // pred_fallthru
      _
    // Predicated region
    $region34: #{dqn_forward.1} parent=1 // pred_check
      _
    $region35: #{dqn_forward.1} parent=1 // pred_check_branch
      %239 = sbr.rel (0) target = $region37
    $region36: #{dqn_forward.1} parent=1 // pred_region
      %240 = dma.done [#allocation3], 32
    $region37: #{dqn_forward.1} parent=1 // pred_fallthru
      _
    %241 = vsyncpa [#allocation3], 1

</llo_original>
